<compile_context>
chip_gen: v7x
topology: tpu7x:2x2x1
jax: 0.10.0
libtpu: 0.0.40
codegen_flags: <defaults>
</compile_context>

<pallas_src>
import jax
import jax.numpy as jnp
from jax.experimental import pallas as pl
from jax.experimental.pallas import tpu as pltpu


def toy_mlp_kernel(x_ref, w1_ref, w2_ref, b_ref, o_ref):
    # x_ref : (Din, TB)   bf16, batch on lanes
    # w1_ref: (Dh, Din)   bf16  (PyTorch (out, in) layout)
    # w2_ref: (Do, Dh)    bf16
    # b_ref : (Dh+Do, 1)  f32   packed [b1; b2]
    # o_ref : (Do, TB)    f32
    dh = w1_ref.shape[0]
    do = w2_ref.shape[0]

    b1 = b_ref[0:dh, :]            # (Dh, 1) -> broadcast over lanes
    b2 = b_ref[dh:dh + do, :]      # (Do, 1)

    # Layer 1: MXU matmul (bf16 operands, f32 accumulate); bias + ReLU in f32.
    h = jnp.dot(w1_ref[...], x_ref[...], preferred_element_type=jnp.float32)
    h = jnp.maximum(h + b1, 0.0)

    # Layer 2.
    y = jnp.dot(w2_ref[...], h.astype(jnp.bfloat16),
                preferred_element_type=jnp.float32)
    o_ref[...] = (y + b2).astype(o_ref.dtype)


def toy_model_forward(x, w1, b1, w2, b2, *, tb=512):
    """ToyModel forward.

    x : (B, 10) float32
    w1: (10, 10), b1: (10,)   -- PyTorch nn.Linear layout (out, in)
    w2: (5, 10),  b2: (5,)
    returns (B, 5) float32
    """
    B, d_in = x.shape
    d_h = w1.shape[0]
    d_out = w2.shape[0]

    # Batch on the lane axis; bf16 matmul operands (halves HBM bytes for x).
    xt = x.astype(jnp.bfloat16).T                              # (Din, B)
    w1b = w1.astype(jnp.bfloat16)                              # (Dh, Din)
    w2b = w2.astype(jnp.bfloat16)                              # (Do, Dh)
    b_packed = jnp.concatenate([b1, b2]).reshape(d_h + d_out, 1).astype(jnp.float32)

    # Tile the batch only when it is big enough to amortize per-step overhead;
    # small batches run as a single full-array block.  Feature dims (10 / 5)
    # are never padded in HBM.
    if B > tb:
        bp = pl.cdiv(B, tb) * tb
        if bp != B:
            xt = jnp.pad(xt, ((0, 0), (0, bp - B)))
        tb_eff = tb
    else:
        bp = B
        tb_eff = B
    grid = (bp // tb_eff,)

    const = lambda shape: pl.BlockSpec(shape, lambda i: (0, 0))

    flops = 2 * bp * (d_in * d_h + d_h * d_out)
    bytes_accessed = (xt.size * xt.dtype.itemsize        # x tiles (bf16)
                      + bp * d_out * 4                   # output (f32)
                      + w1b.size * 2 + w2b.size * 2 + b_packed.size * 4)

    out_t = pl.pallas_call(
        toy_mlp_kernel,
        out_shape=jax.ShapeDtypeStruct((d_out, bp), jnp.float32),
        grid=grid,
        in_specs=[
            pl.BlockSpec((d_in, tb_eff), lambda i: (0, i)),    # x: streams by tile
            const((d_h, d_in)),                                # w1: VMEM-resident
            const((d_out, d_h)),                               # w2: VMEM-resident
            const((d_h + d_out, 1)),                           # packed biases
        ],
        out_specs=pl.BlockSpec((d_out, tb_eff), lambda i: (0, i)),
        compiler_params=pltpu.CompilerParams(
            dimension_semantics=("parallel",)),                # megacore on v7x
        cost_estimate=pl.CostEstimate(
            flops=flops, transcendentals=0, bytes_accessed=bytes_accessed),
    )(xt, w1b, w2b, b_packed)

    return out_t[:, :B].T                                      # (B, Do) float32


def init_params(key):
    # Mimics nn.Linear's default U(-1/sqrt(fan_in), 1/sqrt(fan_in)) init.
    k1, k2, k3, k4 = jax.random.split(key, 4)
    bound = 1.0 / jnp.sqrt(10.0)
    w1 = jax.random.uniform(k1, (10, 10), jnp.float32, -bound, bound)
    b1 = jax.random.uniform(k2, (10,), jnp.float32, -bound, bound)
    w2 = jax.random.uniform(k3, (5, 10), jnp.float32, -bound, bound)
    b2 = jax.random.uniform(k4, (5,), jnp.float32, -bound, bound)
    return w1, b1, w2, b2


if __name__ == "__main__":
    key = jax.random.PRNGKey(0)
    kx, kp = jax.random.split(key)

    B = 256   # small demo batch; multiple of 128 so stores are lane-dense
    x = jax.random.normal(kx, (B, 10), jnp.float32)
    w1, b1, w2, b2 = init_params(kp)

    out = toy_model_forward(x, w1, b1, w2, b2)
    out = jax.block_until_ready(out)

    # Pure-JAX reference emulating the kernel's bf16 operands + f32 accumulation.
    f32 = jnp.float32
    xb = x.astype(jnp.bfloat16).astype(f32)
    w1r = w1.astype(jnp.bfloat16).astype(f32)
    w2r = w2.astype(jnp.bfloat16).astype(f32)
    h_ref = jnp.maximum(xb @ w1r.T + b1, 0.0)
    ref = h_ref.astype(jnp.bfloat16).astype(f32) @ w2r.T + b2

    assert out.shape == (B, 5)
    assert jnp.allclose(out, ref, atol=1e-3, rtol=1e-3), float(
        jnp.max(jnp.abs(out - ref)))

    print("KERNEL_OK")
</pallas_src>

<mosaic_0001>
module attributes {stable_mosaic.version = 11 : i64} {
  func.func @toy_mlp_kernel(%arg0: i32, %arg1: memref<10x256xbf16, #tpu.memory_space<vmem>>, %arg2: memref<10x10xbf16, #tpu.memory_space<vmem>>, %arg3: memref<5x10xbf16, #tpu.memory_space<vmem>>, %arg4: memref<15x1xf32, #tpu.memory_space<vmem>>, %arg5: memref<5x256xf32, #tpu.memory_space<vmem>>) attributes {dimension_semantics = [#tpu.dimension_semantics<parallel>], iteration_bounds = array<i64: 1>, scalar_prefetch = 0 : i64, scratch_operands = 0 : i64, tpu.core_type = #tpu.core_type<tc>, window_params = [{transform_indices = @transform_0, window_bounds = array<i64: 10, 256>}, {pipeline_mode = #tpu.pipeline_mode<synchronous>, transform_indices = @transform_1, window_bounds = array<i64: 10, 10>}, {pipeline_mode = #tpu.pipeline_mode<synchronous>, transform_indices = @transform_2, window_bounds = array<i64: 5, 10>}, {pipeline_mode = #tpu.pipeline_mode<synchronous>, transform_indices = @transform_3, window_bounds = array<i64: 15, 1>}, {transform_indices = @transform_4, window_bounds = array<i64: 5, 256>}]} {
    %c0 = arith.constant 0 : index
    %c0_0 = arith.constant 0 : index
    %0 = vector.load %arg4[%c0, %c0_0] : memref<15x1xf32, #tpu.memory_space<vmem>>, vector<10x1xf32>
    %c10 = arith.constant 10 : index
    %c0_1 = arith.constant 0 : index
    %1 = vector.load %arg4[%c10, %c0_1] : memref<15x1xf32, #tpu.memory_space<vmem>>, vector<5x1xf32>
    %c0_2 = arith.constant 0 : index
    %c0_3 = arith.constant 0 : index
    %2 = vector.load %arg2[%c0_2, %c0_3] : memref<10x10xbf16, #tpu.memory_space<vmem>>, vector<10x10xbf16>
    %c0_4 = arith.constant 0 : index
    %c0_5 = arith.constant 0 : index
    %3 = vector.load %arg1[%c0_4, %c0_5] : memref<10x256xbf16, #tpu.memory_space<vmem>>, vector<10x256xbf16>
    %cst = arith.constant dense<0.000000e+00> : vector<10x256xf32>
    %4 = tpu.matmul %2, %3, %cst {dimension_numbers = #tpu.dot_dimension_numbers<[1], [0], [0], [1], [0, 0, 1, 1], [], []>} : vector<10x10xbf16>, vector<10x256xbf16>, vector<10x256xf32> -> vector<10x256xf32>
    %5 = vector.broadcast %0 : vector<10x1xf32> to vector<10x256xf32>
    %6 = arith.addf %4, %5 : vector<10x256xf32>
    %cst_6 = arith.constant 0.000000e+00 : f32
    %7 = vector.broadcast %cst_6 : f32 to vector<10x256xf32>
    %8 = arith.maximumf %6, %7 : vector<10x256xf32>
    %c0_7 = arith.constant 0 : index
    %c0_8 = arith.constant 0 : index
    %9 = vector.load %arg3[%c0_7, %c0_8] : memref<5x10xbf16, #tpu.memory_space<vmem>>, vector<5x10xbf16>
    %10 = arith.truncf %8 : vector<10x256xf32> to vector<10x256xbf16>
    %cst_9 = arith.constant dense<0.000000e+00> : vector<5x256xf32>
    %11 = tpu.matmul %9, %10, %cst_9 {dimension_numbers = #tpu.dot_dimension_numbers<[1], [0], [0], [1], [0, 0, 1, 1], [], []>} : vector<5x10xbf16>, vector<10x256xbf16>, vector<5x256xf32> -> vector<5x256xf32>
    %12 = vector.broadcast %1 : vector<5x1xf32> to vector<5x256xf32>
    %13 = arith.addf %11, %12 : vector<5x256xf32>
    %c0_10 = arith.constant 0 : index
    %c0_11 = arith.constant 0 : index
    %14 = vector.load %arg5[%c0_10, %c0_11] : memref<5x256xf32, #tpu.memory_space<vmem>>, vector<5x256xf32>
    tpu.vector_store %arg5[%c0_10, %c0_11], %13 {strides = array<i32>} : memref<5x256xf32, #tpu.memory_space<vmem>>, vector<5x256xf32>,
    return
  }
  func.func @transform_0(%arg0: i32) -> (i32, i32) {
    %c0_i32 = arith.constant 0 : i32
    %c0_i32_0 = arith.constant 0 : i32
    return %c0_i32, %arg0 : i32, i32
  }
  func.func @transform_1(%arg0: i32) -> (i32, i32) {
    %c0_i32 = arith.constant 0 : i32
    %c0_i32_0 = arith.constant 0 : i32
    %c0_i32_1 = arith.constant 0 : i32
    return %c0_i32, %c0_i32_0 : i32, i32
  }
  func.func @transform_2(%arg0: i32) -> (i32, i32) {
    %c0_i32 = arith.constant 0 : i32
    %c0_i32_0 = arith.constant 0 : i32
    %c0_i32_1 = arith.constant 0 : i32
    return %c0_i32, %c0_i32_0 : i32, i32
  }
  func.func @transform_3(%arg0: i32) -> (i32, i32) {
    %c0_i32 = arith.constant 0 : i32
    %c0_i32_0 = arith.constant 0 : i32
    %c0_i32_1 = arith.constant 0 : i32
    return %c0_i32, %c0_i32_0 : i32, i32
  }
  func.func @transform_4(%arg0: i32) -> (i32, i32) {
    %c0_i32 = arith.constant 0 : i32
    %c0_i32_0 = arith.constant 0 : i32
    return %c0_i32, %arg0 : i32, i32
  }
}

</mosaic_0001>

<llo_original>
// kernel: tpu_custom_call.1
$region0: #{tpu_custom_call.1}
  #allocation0 [shape = 'u32[]', space=smem, size = 0x4, offset = 0x4, fixed_abs, tag = 'smem constant byte address 0x4 - core index']
  #allocation1 [shape = 'u32[144,128]{1,0:T(1,128)}', space=vmem, size = 0x12000, scoped, tag = 'internal scratch']
  %s0 = inlined_call_operand.vmem [shape: bf16[10,256], index: 0, kind: input, shape index: {}]
  %s1 = inlined_call_operand.hbm [shape: bf16[10,10], index: 1, kind: input, shape index: {}]
  %s2 = inlined_call_operand.vmem [shape: bf16[5,10], index: 2, kind: input, shape index: {}]
  %s3 = inlined_call_operand.vmem [shape: f32[15,1], index: 3, kind: input, shape index: {}]
  %s4 = inlined_call_operand.hbm [shape: f32[5,256], index: 4, kind: output, shape index: {}]
  %s5 = sld [smem:[#allocation0]]
  $region30: #{tpu_custom_call.1} parent=0
    _
  %s7 = ssub.s32 1, %s5
  %s8 = scalar_select 0, %s7, %s5
  $region1: #{tpu_custom_call.1} parent=0
    #allocation2 [shape = 'u8[4096]{0}', space=vmem, size = 0x1000, scoped, tag = 'input window, operand 1, single buffered']
    #allocation3 [shape = 's32[1]{0}', space=sflag, size = 0x4, scoped, tag = 'scoped memory for tpu_custom_call.1']
    #allocation4 [shape = 's32[1]{0}', space=sflag, size = 0x4, scoped, tag = 'scoped memory for tpu_custom_call.1']
    #allocation5 [shape = 'u8[8192]{0}', space=vmem, size = 0x2000, scoped, tag = 'output window, operand 0, single buffered']
    %9 = vsyncpa [#allocation3], 0
    %10 = vsyncpa [#allocation4], 0
    // Predicated region
    $region2: #{tpu_custom_call.1} parent=1 // pred_check
      _
    $region3: #{tpu_custom_call.1} parent=1 // pred_check_branch
      %12 = sbr.rel (0) target = $region5
    $region4: #{tpu_custom_call.1} parent=1 // pred_region
      _
    $region5: #{tpu_custom_call.1} parent=1 // pred_fallthru
      _
    // Predicated region
    $region6: #{tpu_custom_call.1} parent=1 // pred_check
      _
    $region7: #{tpu_custom_call.1} parent=1 // pred_check_branch
      %14 = sbr.rel (0) target = $region9
    $region8: #{tpu_custom_call.1} parent=1 // pred_region
      %s16 = ssub.s32 128, 128
      %17 = vsyncadd [#allocation3], %s16
      %s18 = sshll.u32 [#allocation2], 4
      %s19 = int_to_ptr.vmem [resolvable:$true] %s18
      %24 = dma.hbm_to_vmem [thread:$0]  %s1, 128, %s19, [#allocation3], 64, 64, 4
    $region9: #{tpu_custom_call.1} parent=1 // pred_fallthru
      _
    // Predicated region
    $region10: #{tpu_custom_call.1} parent=1 // pred_check
      _
    $region11: #{tpu_custom_call.1} parent=1 // pred_check_branch
      %26 = sbr.rel (0) target = $region13
    $region12: #{tpu_custom_call.1} parent=1 // pred_region
      _
    $region13: #{tpu_custom_call.1} parent=1 // pred_fallthru
      _
    // Predicated region
    $region14: #{tpu_custom_call.1} parent=1 // pred_check
      _
    $region15: #{tpu_custom_call.1} parent=1 // pred_check_branch
      %28 = sbr.rel (0) target = $region17
    $region16: #{tpu_custom_call.1} parent=1 // pred_region
      _
    $region17: #{tpu_custom_call.1} parent=1 // pred_fallthru
      _
    // Predicated region
    $region18: #{tpu_custom_call.1} parent=1 // pred_check
      _
    $region19: #{tpu_custom_call.1} parent=1 // pred_check_branch
      %30 = sbr.rel (0) target = $region21
    $region20: #{tpu_custom_call.1} parent=1 // pred_region
      %31 = dma.done [#allocation3], 128
    $region21: #{tpu_custom_call.1} parent=1 // pred_fallthru
      _
    %v33 = vld [vmem:[%s3] sm:$0xff]
    %v34 = vld [vmem:[%s3 + $0x8] sm:$0x3]
    %v35 = vld [vmem:[%s3 + $0xa] sm:$0x1f]
    %v36 = vld [vmem:[#allocation2] sm:$0xf]
    %v37 = vld [vmem:[#allocation2 + $0x4] sm:$0x1]
    %v38 = vld [vmem:[%s0] sm:$0xff]
    %v39 = vld [vmem:[%s0 + $0x8] sm:$0x11]
    %41 = vset.pattern.permute.xlu0 0
    %42 = vperm.xlu0 %41, %v33
    %v43 = vpop.permute.xlu0 %42
    %46 = vset.pattern.permute.xlu0 0
    %47 = vperm.xlu0 %46, %v34
    %v48 = vpop.permute.xlu0 %47
    %v52 = vunpack.c.l.b16 %v36
    %v53 = vunpack.c.l.b16 %v37
    %v54 = vpack.c.b16 %v53, %v52
    %v57 = vunpack.c.l.b16 %v38
    %v58 = vunpack.c.h.b16 %v38
    %v59 = vunpack.c.l.b16 %v39
    %v60 = vunpack.c.h.b16 %v39
    %v61 = vpack.c.b16 %v59, %v57
    %v62 = vpack.c.b16 %v60, %v58
    %vm63 = vcmask 80896
    %v65 = vsel %vm63, %v54, 0
    %vm67 = vcmask 1044480
    %v69 = vsel %vm67, %v61, 0
    %v72 = vsel %vm67, %v62, 0
    %74 = vmatprep.subr.bf16.mxu0 %v72
    %75 = vmatpush1.bf16.msra.mxu0 %v69
    %76 = vmatprep.subr.bf16.mxu0 0
    %77 = vmatpush1.bf16.msra.mxu0 0
    %78 = vmatprep.subr.bf16.mxu0 0
    %79 = vmatpush1.bf16.msra.mxu0 0
    %80 = vmatprep.subr.bf16.mxu0 0
    %81 = vmatpush1.bf16.msra.mxu0 0
    %82 = vmatprep.subr.bf16.mxu0 0
    %83 = vmatpush1.bf16.msra.mxu0 0
    %84 = vmatprep.subr.bf16.mxu0 0
    %85 = vmatpush1.bf16.msra.mxu0 0
    %86 = vmatprep.subr.bf16.mxu0 0
    %87 = vmatpush1.bf16.msra.mxu0 0
    %88 = vmatprep.subr.bf16.mxu0 0
    %89 = vmatpush1.bf16.msra.mxu0 0
    %90 = vmatprep.subr.bf16.mxu0 0
    %91 = vmatpush1.bf16.msra.mxu0 0
    %92 = vmatprep.subr.bf16.mxu0 0
    %93 = vmatpush1.bf16.msra.mxu0 0
    %94 = vmatprep.subr.bf16.mxu0 0
    %95 = vmatpush1.bf16.msra.mxu0 0
    %96 = vmatprep.subr.bf16.mxu0 0
    %97 = vmatpush1.bf16.msra.mxu0 0
    %98 = vmatprep.subr.bf16.mxu0 0
    %99 = vmatpush1.bf16.msra.mxu0 0
    %100 = vmatprep.subr.bf16.mxu0 0
    %101 = vmatpush1.bf16.msra.mxu0 0
    %102 = vmatprep.subr.bf16.mxu0 0
    %103 = vmatpush1.bf16.msra.mxu0 0
    %104 = vmatprep.subr.bf16.mxu0 0
    %105 = vmatpush1.bf16.msra.mxu0 0
    %106 = vmatprep.mubr.bf16.mxu0 0
    %107 = vmatmul.mubr.bf16.gmra.mrb[0].mxu0 %v65
    %v108 = vpop.f32.mrb[0].mxu0
    %v109 = vadd.f32 %v43, %v108
    %v110 = vpop.f32.mrb[0].mxu0
    %v111 = vadd.f32 %v43, %v110
    %v112 = vpop.f32.mrb[0].mxu0
    %v113 = vadd.f32 %v48, %v112
    %v114 = vpop.f32.mrb[0].mxu0
    %v115 = vadd.f32 %v48, %v114
    %116 = vdwg.mxu0
    %v117 = vmax.f32 %v109, 0.0
    %v118 = vmax.f32 %v111, 0.0
    %v119 = vmax.f32 %v113, 0.0
    %v120 = vmax.f32 %v115, 0.0
    %v121 = vld [vmem:[%s2] sm:$0x7]
    %v122 = vpack.c.bf16 %v119, %v117
    %v123 = vpack.c.bf16 %v120, %v118
    %125 = vset.pattern.permute.xlu0 0
    %126 = vperm.xlu0 %125, %v35
    %v127 = vpop.permute.xlu0 %126
    %v130 = vsel %vm63, %v121, 0
    %v133 = vsel %vm67, %v122, 0
    %v136 = vsel %vm67, %v123, 0
    %138 = vmatprep.subr.bf16.mxu0 %v136
    %139 = vmatpush1.bf16.msra.mxu0 %v133
    %140 = vmatprep.subr.bf16.mxu0 0
    %141 = vmatpush1.bf16.msra.mxu0 0
    %142 = vmatprep.subr.bf16.mxu0 0
    %143 = vmatpush1.bf16.msra.mxu0 0
    %144 = vmatprep.subr.bf16.mxu0 0
    %145 = vmatpush1.bf16.msra.mxu0 0
    %146 = vmatprep.subr.bf16.mxu0 0
    %147 = vmatpush1.bf16.msra.mxu0 0
    %148 = vmatprep.subr.bf16.mxu0 0
    %149 = vmatpush1.bf16.msra.mxu0 0
    %150 = vmatprep.subr.bf16.mxu0 0
    %151 = vmatpush1.bf16.msra.mxu0 0
    %152 = vmatprep.subr.bf16.mxu0 0
    %153 = vmatpush1.bf16.msra.mxu0 0
    %154 = vmatprep.subr.bf16.mxu0 0
    %155 = vmatpush1.bf16.msra.mxu0 0
    %156 = vmatprep.subr.bf16.mxu0 0
    %157 = vmatpush1.bf16.msra.mxu0 0
    %158 = vmatprep.subr.bf16.mxu0 0
    %159 = vmatpush1.bf16.msra.mxu0 0
    %160 = vmatprep.subr.bf16.mxu0 0
    %161 = vmatpush1.bf16.msra.mxu0 0
    %162 = vmatprep.subr.bf16.mxu0 0
    %163 = vmatpush1.bf16.msra.mxu0 0
    %164 = vmatprep.subr.bf16.mxu0 0
    %165 = vmatpush1.bf16.msra.mxu0 0
    %166 = vmatprep.subr.bf16.mxu0 0
    %167 = vmatpush1.bf16.msra.mxu0 0
    %168 = vmatprep.subr.bf16.mxu0 0
    %169 = vmatpush1.bf16.msra.mxu0 0
    %170 = vmatprep.mubr.bf16.mxu0 0
    %171 = vmatmul.mubr.bf16.gmra.mrb[0].mxu0 %v130
    %v172 = vpop.f32.mrb[0].mxu0
    %v173 = vadd.f32 %v127, %v172
    %v174 = vpop.f32.mrb[0].mxu0
    %v175 = vadd.f32 %v127, %v174
    %v176 = vpop.f32.mrb[0].mxu0
    %v177 = vpop.f32.mrb[0].mxu0
    %178 = vdwg.mxu0
    %179 = vst [vmem:[#allocation5] sm:$0x1f] %v173
    %180 = vst [vmem:[#allocation5 + $0x8] sm:$0x1f] %v175
    // Predicated region
    $region22: #{tpu_custom_call.1} parent=1 // pred_check
      _
    $region23: #{tpu_custom_call.1} parent=1 // pred_check_branch
      %182 = sbr.rel (0) target = $region25
    $region24: #{tpu_custom_call.1} parent=1 // pred_region
      %s184 = ssub.s32 256, 256
      %185 = vsyncadd [#allocation4], %s184
      %s187 = sshll.u32 [#allocation5], 4
      %s188 = int_to_ptr.vmem [resolvable:$true] %s187
      %190 = dma.vmem_to_hbm [thread:$0]  %s188, 256, %s4, [#allocation4]
    $region25: #{tpu_custom_call.1} parent=1 // pred_fallthru
      _
    // Predicated region
    $region26: #{tpu_custom_call.1} parent=1 // pred_check
      _
    $region27: #{tpu_custom_call.1} parent=1 // pred_check_branch
      %192 = sbr.rel (0) target = $region29
    $region28: #{tpu_custom_call.1} parent=1 // pred_region
      %193 = dma.done [#allocation4], 256
    $region29: #{tpu_custom_call.1} parent=1 // pred_fallthru
      _
    %194 = vsyncpa [#allocation3], 1
    %195 = vsyncpa [#allocation4], 1

</llo_original>
